<compile_context>
chip_gen: v6e
topology: v6e:2x2x1
jax: 0.10.0
libtpu: 0.0.40
codegen_flags: <defaults>
</compile_context>

<pallas_src>
import jax
import jax.numpy as jnp
from jax import lax
from jax.experimental import pallas as pl
from jax.experimental.pallas import tpu as pltpu


def _round_up(a, b):
    return (a + b - 1) // b * b


def _gram_kernel(xq_ref, xk_ref, o_ref):
    # xq_ref: (T, Dp), xk_ref: (T, Dp), o_ref: (T, T)
    xq = xq_ref[...]
    xk = xk_ref[...]
    xq_f = xq.astype(jnp.float32)
    xk_f = xk.astype(jnp.float32)
    # F.normalize(p=2, dim=-1): x / max(||x||, 1e-12) == x * rsqrt(max(||x||^2, 1e-24))
    inv_q = lax.rsqrt(jnp.maximum(jnp.sum(xq_f * xq_f, axis=-1, keepdims=True), 1e-24))
    inv_k = lax.rsqrt(jnp.maximum(jnp.sum(xk_f * xk_f, axis=-1, keepdims=True), 1e-24))
    # Keep MXU operands in the input dtype (bf16 inputs stay bf16), accumulate in f32.
    xqn = (xq_f * inv_q).astype(xq.dtype)
    xkn = (xk_f * inv_k).astype(xk.dtype)
    gram = lax.dot_general(
        xqn,
        xkn,
        dimension_numbers=(((1,), (1,)), ((), ())),  # contract D without transposing
        preferred_element_type=jnp.float32,
    )
    o_ref[...] = gram.astype(o_ref.dtype)


def forensic_attention_output(x, *, tile=256):
    """x: (B, S, D) -> (B, S, S) per-batch cosine-similarity Gram matrix."""
    B, S, D = x.shape

    # Lane-dense tiles: output tile (and padded S) are multiples of 128.
    # 256 keeps the double-buffered working set small enough for v7x's 64 MiB
    # VMEM while matching the 256x256 MXU on v6e/v7x.
    T = min(tile, _round_up(S, 128))
    Sp = _round_up(S, T)
    Dp = _round_up(D, 128)

    if (Sp, Dp) != (S, D):
        x_p = jnp.pad(x, ((0, 0), (0, Sp - S), (0, Dp - D)))
    else:
        x_p = x

    grid = (B, Sp // T, Sp // T)
    itemsize = jnp.dtype(x.dtype).itemsize

    out = pl.pallas_call(
        _gram_kernel,
        out_shape=jax.ShapeDtypeStruct((B, Sp, Sp), x.dtype),
        grid_spec=pltpu.PrefetchScalarGridSpec(
            num_scalar_prefetch=0,
            grid=grid,
            in_specs=[
                # "query" rows (block row i) and "key" rows (block col j)
                pl.BlockSpec((pl.Squeezed(), T, Dp), lambda b, i, j: (b, i, 0)),
                pl.BlockSpec((pl.Squeezed(), T, Dp), lambda b, i, j: (b, j, 0)),
            ],
            out_specs=pl.BlockSpec((pl.Squeezed(), T, T), lambda b, i, j: (b, i, j)),
        ),
        compiler_params=pltpu.CompilerParams(
            dimension_semantics=("parallel", "parallel", "parallel"),
        ),
        cost_estimate=pl.CostEstimate(
            flops=2 * B * Sp * Sp * Dp,
            transcendentals=2 * B * Sp * (Sp // T),
            bytes_accessed=(2 * B * Sp * Dp + B * Sp * Sp) * itemsize,
        ),
    )(x_p, x_p)

    if Sp != S:
        out = out[:, :S, :S]
    return out


def _reference(x):
    # Pure-JAX reference mirroring the PyTorch module (F.normalize then x @ x^T).
    xf = x.astype(jnp.float32)
    norm = jnp.sqrt(jnp.sum(xf * xf, axis=2, keepdims=True))
    xn = xf / jnp.maximum(norm, 1e-12)
    return jnp.einsum("bsd,btd->bst", xn, xn).astype(x.dtype)


if __name__ == "__main__":
    key = jax.random.PRNGKey(0)
    B, S, D = 2, 8, 32  # embed_dim = 32
    x = jax.random.normal(key, (B, S, D), dtype=jnp.float32)

    out = forensic_attention_output(x)
    jax.block_until_ready(out)

    ref = _reference(x)
    assert out.shape == (B, S, S)
    assert jnp.allclose(out, ref, atol=1e-5, rtol=1e-5), "mismatch vs reference"

    print("KERNEL_OK")
</pallas_src>

<mosaic_0001>
module attributes {stable_mosaic.version = 11 : i64} {
  func.func @_gram_kernel(%arg0: i32, %arg1: i32, %arg2: i32, %arg3: memref<1x128x128xf32, #tpu.memory_space<vmem>>, %arg4: memref<1x128x128xf32, #tpu.memory_space<vmem>>, %arg5: memref<1x128x128xf32, #tpu.memory_space<vmem>>) attributes {dimension_semantics = [#tpu.dimension_semantics<parallel>, #tpu.dimension_semantics<parallel>, #tpu.dimension_semantics<parallel>], iteration_bounds = array<i64: 2, 1, 1>, scalar_prefetch = 0 : i64, scratch_operands = 0 : i64, tpu.core_type = #tpu.core_type<tc>, window_params = [{transform_indices = @transform_0, window_bounds = array<i64: 1, 128, 128>}, {transform_indices = @transform_1, window_bounds = array<i64: 1, 128, 128>}, {transform_indices = @transform_2, window_bounds = array<i64: 1, 128, 128>}]} {
    %c0 = arith.constant 0 : index
    %c0_0 = arith.constant 0 : index
    %c0_1 = arith.constant 0 : index
    %0 = vector.load %arg3[%c0, %c0_0, %c0_1] : memref<1x128x128xf32, #tpu.memory_space<vmem>>, vector<1x128x128xf32>
    %1 = vector.shape_cast %0 : vector<1x128x128xf32> to vector<128x128xf32>
    %c0_2 = arith.constant 0 : index
    %c0_3 = arith.constant 0 : index
    %c0_4 = arith.constant 0 : index
    %2 = vector.load %arg4[%c0_2, %c0_3, %c0_4] : memref<1x128x128xf32, #tpu.memory_space<vmem>>, vector<1x128x128xf32>
    %3 = vector.shape_cast %2 : vector<1x128x128xf32> to vector<128x128xf32>
    %4 = arith.mulf %1, %1 : vector<128x128xf32>
    %cst = arith.constant dense<0.000000e+00> : vector<128xf32>
    %5 = vector.multi_reduction <add>, %4, %cst [1] : vector<128x128xf32> to vector<128xf32>
    %6 = vector.shape_cast %5 : vector<128xf32> to vector<128x1xf32>
    %cst_5 = arith.constant 1.000000e-24 : f32
    %7 = vector.broadcast %cst_5 : f32 to vector<128x1xf32>
    %8 = arith.maximumf %6, %7 : vector<128x1xf32>
    %9 = math.rsqrt %8 : vector<128x1xf32>
    %10 = arith.mulf %3, %3 : vector<128x128xf32>
    %cst_6 = arith.constant dense<0.000000e+00> : vector<128xf32>
    %11 = vector.multi_reduction <add>, %10, %cst_6 [1] : vector<128x128xf32> to vector<128xf32>
    %12 = vector.shape_cast %11 : vector<128xf32> to vector<128x1xf32>
    %cst_7 = arith.constant 1.000000e-24 : f32
    %13 = vector.broadcast %cst_7 : f32 to vector<128x1xf32>
    %14 = arith.maximumf %12, %13 : vector<128x1xf32>
    %15 = math.rsqrt %14 : vector<128x1xf32>
    %16 = vector.broadcast %9 : vector<128x1xf32> to vector<128x128xf32>
    %17 = arith.mulf %1, %16 : vector<128x128xf32>
    %18 = vector.broadcast %15 : vector<128x1xf32> to vector<128x128xf32>
    %19 = arith.mulf %3, %18 : vector<128x128xf32>
    %cst_8 = arith.constant dense<0.000000e+00> : vector<128x128xf32>
    %20 = tpu.matmul %17, %19, %cst_8 {dimension_numbers = #tpu.dot_dimension_numbers<[1], [1], [0], [0], [0, 0, 1, 0], [], []>} : vector<128x128xf32>, vector<128x128xf32>, vector<128x128xf32> -> vector<128x128xf32>
    %c0_9 = arith.constant 0 : index
    %c0_10 = arith.constant 0 : index
    %c0_11 = arith.constant 0 : index
    %21 = vector.load %arg5[%c0_9, %c0_10, %c0_11] : memref<1x128x128xf32, #tpu.memory_space<vmem>>, vector<1x128x128xf32>
    %22 = vector.shape_cast %21 : vector<1x128x128xf32> to vector<128x128xf32>
    %23 = vector.shape_cast %20 : vector<128x128xf32> to vector<1x128x128xf32>
    tpu.vector_store %arg5[%c0_9, %c0_10, %c0_11], %23 {strides = array<i32>} : memref<1x128x128xf32, #tpu.memory_space<vmem>>, vector<1x128x128xf32>,
    return
  }
  func.func @transform_0(%arg0: i32, %arg1: i32, %arg2: i32) -> (i32, i32, i32) {
    %c0_i32 = arith.constant 0 : i32
    %c0_i32_0 = arith.constant 0 : i32
    return %arg0, %arg1, %c0_i32 : i32, i32, i32
  }
  func.func @transform_1(%arg0: i32, %arg1: i32, %arg2: i32) -> (i32, i32, i32) {
    %c0_i32 = arith.constant 0 : i32
    %c0_i32_0 = arith.constant 0 : i32
    return %arg0, %arg2, %c0_i32 : i32, i32, i32
  }
  func.func @transform_2(%arg0: i32, %arg1: i32, %arg2: i32) -> (i32, i32, i32) {
    %c0_i32 = arith.constant 0 : i32
    return %arg0, %arg1, %arg2 : i32, i32, i32
  }
}

</mosaic_0001>

<llo_original>
// kernel: tpu_custom_call.1
$region0: #{tpu_custom_call.1}
  #allocation0 [shape = 'u32[]', space=smem, size = 0x4, offset = 0x4, fixed_abs, tag = 'smem constant byte address 0x4 - core index']
  #allocation1 [shape = 'u32[144,128]{1,0:T(1,128)}', space=vmem, size = 0x12000, scoped, tag = 'internal scratch']
  %s0 = inlined_call_operand.hbm [shape: f32[2,128,128], index: 0, kind: input, shape index: {}]
  %s1 = inlined_call_operand.hbm [shape: f32[2,128,128], index: 1, kind: input, shape index: {}]
  %s2 = inlined_call_operand.hbm [shape: f32[2,128,128], index: 2, kind: output, shape index: {}]
  %s3 = sld [smem:[#allocation0]]
  $region49: #{tpu_custom_call.1} parent=0
    _
  %s5 = ssub.s32 1, %s3
  %s6 = scalar_select 0, %s5, %s3
  $region1: #{tpu_custom_call.1} parent=0
    #allocation2 [shape = 'u8[131072]{0}', space=vmem, size = 0x20000, scoped, tag = 'input window, operand 0']
    #allocation3 [shape = 's32[2]{0}', space=sflag, size = 0x8, scoped, tag = 'scoped memory for tpu_custom_call.1']
    #allocation4 [shape = 's32[2]{0}', space=sflag, size = 0x8, scoped, tag = 'scoped memory for tpu_custom_call.1']
    #allocation5 [shape = 'u8[131072]{0}', space=vmem, size = 0x20000, scoped, tag = 'input window, operand 1']
    #allocation6 [shape = 's32[2]{0}', space=sflag, size = 0x8, scoped, tag = 'scoped memory for tpu_custom_call.1']
    #allocation7 [shape = 'u8[131072]{0}', space=vmem, size = 0x20000, scoped, tag = 'output window, operand 0']
    %7 = vsyncpa [#allocation3], 0
    %s8 = scalar_lea.sflag [#allocation3], 1
    %9 = vsyncpa %s8, 0
    %10 = vsyncpa [#allocation6], 0
    %s11 = scalar_lea.sflag [#allocation6], 1
    %12 = vsyncpa %s11, 0
    %13 = vsyncpa [#allocation4], 0
    %s14 = scalar_lea.sflag [#allocation4], 1
    %15 = vsyncpa %s14, 0
    loop: start=0, step=1, limit=4
    $region2: #{tpu_custom_call.1} parent=1 // loop_pre_header
      _
    $region3: #{tpu_custom_call.1} parent=1 // loop_header
      %s17 = sphi 0, %s21
      %p18 = scmp.ge.s32.totalorder %s17, 4
      %s24 = sphi 0, %s43
      %s25 = sphi 0, %s39
      %s26 = sphi 0, %s35
      %s27 = sphi 0, %s24
      %s28 = sphi 0, %s25
      %s29 = sphi 0, %s26
      %s30 = sphi 0, %s27
      %s31 = sphi 0, %s28
      %s32 = sphi 0, %s29
      %s48 = sphi 0, %s50
      %s51 = sphi 0, %s48
      %s52 = sphi 0, %s51
      %s68 = sphi 0, %s52
      %s76 = sphi 0, %s78
      %s79 = sphi 0, %s76
      %s80 = sphi 0, %s79
      %s96 = sphi 0, %s80
      %s106 = sphi 0, %s108
      %s109 = sphi 0, %s106
      %s110 = sphi 0, %s109
      %s126 = sphi 0, %s110
    $region4: #{tpu_custom_call.1} parent=1 // loop_header_branch
      %20 = sbr.rel (%p18) target = $region8
    $region5: #{tpu_custom_call.1} parent=1 // loop_body
      %s22 = ssub.s32 %s17, 1
      %s23 = ssub.s32 %s17, 2
      %s33 = sadd.s32 1, %s26
      %p34 = scmp.ge.s32.totalorder %s33, 1
      %s35 = scalar_select %p34, 0, %s33
      %s36 = sadd.s32 1, %s25
      %s37 = scalar_select %p34, %s36, %s25
      %p38 = scmp.ge.s32.totalorder %s37, 1
      %s39 = scalar_select %p38, 0, %s37
      %s40 = sadd.s32 1, %s24
      %s41 = scalar_select %p38, %s40, %s24
      %p42 = scmp.ge.s32.totalorder %s41, 2
      %s43 = scalar_select %p42, 0, %s41
      %s44 = ssub.s32 %s24, %s43
      %s45 = ssub.s32 %s25, %s39
      %s46 = sor.u32 %s44, %s45
      %p47 = scmp.eq.s32.totalorder %s46, 0
      %s49 = sadd.s32 %s48, 1
      %s50 = scalar_select %p47, %s48, %s49
      %p53 = pneg %p47
      %p54 = scmp.eq.s32.totalorder %s17, 1
      %p55 = por %p53, %p54
      %p56 = scmp.ne.s32.totalorder %s48, %s51
      %p57 = scmp.eq.s32.totalorder %s17, 0
      %p58 = por %p56, %p57
      %p59 = scmp.ne.s32.totalorder %s48, %s51
      %p60 = scmp.eq.s32.totalorder %s22, 1
      %p61 = por %p59, %p60
      %p62 = scmp.ne.s32.totalorder %s51, %s52
      %p63 = scmp.eq.s32.totalorder %s22, 0
      %p64 = por %p62, %p63
      %p65 = scmp.ne.s32.totalorder %s51, %s52
      %p66 = scmp.eq.s32.totalorder %s23, 1
      %p67 = por %p65, %p66
      %p69 = scmp.ne.s32.totalorder %s52, %s68
      %p70 = scmp.eq.s32.totalorder %s23, 0
      %p71 = por %p69, %p70
      %s72 = ssub.s32 %s24, %s43
      %s73 = ssub.s32 %s26, %s35
      %s74 = sor.u32 %s72, %s73
      %p75 = scmp.eq.s32.totalorder %s74, 0
      %s77 = sadd.s32 %s76, 1
      %s78 = scalar_select %p75, %s76, %s77
      %p81 = pneg %p75
      %p82 = scmp.eq.s32.totalorder %s17, 1
      %p83 = por %p81, %p82
      %p84 = scmp.ne.s32.totalorder %s76, %s79
      %p85 = scmp.eq.s32.totalorder %s17, 0
      %p86 = por %p84, %p85
      %p87 = scmp.ne.s32.totalorder %s76, %s79
      %p88 = scmp.eq.s32.totalorder %s22, 1
      %p89 = por %p87, %p88
      %p90 = scmp.ne.s32.totalorder %s79, %s80
      %p91 = scmp.eq.s32.totalorder %s22, 0
      %p92 = por %p90, %p91
      %p93 = scmp.ne.s32.totalorder %s79, %s80
      %p94 = scmp.eq.s32.totalorder %s23, 1
      %p95 = por %p93, %p94
      %p97 = scmp.ne.s32.totalorder %s80, %s96
      %p98 = scmp.eq.s32.totalorder %s23, 0
      %p99 = por %p97, %p98
      %s100 = ssub.s32 %s24, %s43
      %s101 = ssub.s32 %s25, %s39
      %s102 = sor.u32 %s100, %s101
      %s103 = ssub.s32 %s26, %s35
      %s104 = sor.u32 %s102, %s103
      %p105 = scmp.eq.s32.totalorder %s104, 0
      %s107 = sadd.s32 %s106, 1
      %s108 = scalar_select %p105, %s106, %s107
      %p111 = pneg %p105
      %p112 = scmp.eq.s32.totalorder %s17, 1
      %p113 = por %p111, %p112
      %p114 = scmp.ne.s32.totalorder %s106, %s109
      %p115 = scmp.eq.s32.totalorder %s17, 0
      %p116 = por %p114, %p115
      %p117 = scmp.ne.s32.totalorder %s106, %s109
      %p118 = scmp.eq.s32.totalorder %s22, 1
      %p119 = por %p117, %p118
      %p120 = scmp.ne.s32.totalorder %s109, %s110
      %p121 = scmp.eq.s32.totalorder %s22, 0
      %p122 = por %p120, %p121
      %p123 = scmp.ne.s32.totalorder %s109, %s110
      %p124 = scmp.eq.s32.totalorder %s23, 1
      %p125 = por %p123, %p124
      %p127 = scmp.ne.s32.totalorder %s110, %s126
      %p128 = scmp.eq.s32.totalorder %s23, 0
      %p129 = por %p127, %p128
      %p130 = scmp.le.s32.totalorder 1, %s17
      %p131 = scmp.lt.s32.totalorder %s17, 3
      %p132 = pnand %p130, %p131
      %p133 = pneg %p132
      // Predicated region
      $region9: #{tpu_custom_call.1} parent=5 // pred_check
        _
      $region10: #{tpu_custom_call.1} parent=5 // pred_check_branch
        %135 = sbr.rel (%p132) target = $region12
      $region11: #{tpu_custom_call.1} parent=5 // pred_region
        %s136 = ssub.s32 %s17, 1
      $region12: #{tpu_custom_call.1} parent=5 // pred_fallthru
        _
      %p137 = scmp.lt.s32.totalorder %s17, 2
      // Predicated region
      $region13: #{tpu_custom_call.1} parent=5 // pred_check
        %p138 = pneg %p137
      $region14: #{tpu_custom_call.1} parent=5 // pred_check_branch
        %140 = sbr.rel (%p138) target = $region16
      $region15: #{tpu_custom_call.1} parent=5 // pred_region
        // Predicated region
        $region17: #{tpu_custom_call.1} parent=15 // pred_check
          %p141 = pneg %p58
        $region18: #{tpu_custom_call.1} parent=15 // pred_check_branch
          %143 = sbr.rel (%p141) target = $region20
        $region19: #{tpu_custom_call.1} parent=15 // pred_region
          %s144 = sand.u32 %s48, 1
          %s145 = scalar_lea.sflag [#allocation3], %s144
          %s146 = sand.u32 %s48, 1
          %s147 = smul.addr %s146, 128
          %s148 = scalar_lea.vmem [#allocation2], %s147
          %s149 = smul.u32 16, %s25
          %s151 = ssub.s32 2048, 2048
          %152 = vsyncadd %s145, %s151
          %s153 = smul.addr %s24, 16
          %s154 = sadd.s32 %s149, %s153
          %s155 = smul.addr %s154, 128
          %s156 = scalar_lea.hbm %s0, %s155
          %s157 = sshll.u32 %s148, 4
          %s158 = int_to_ptr.vmem [resolvable:$true] %s157
          %163 = dma.hbm_to_vmem [thread:$0]  %s156, 2048, %s158, %s145, 128, 128, 8
        $region20: #{tpu_custom_call.1} parent=15 // pred_fallthru
          _
        // Predicated region
        $region21: #{tpu_custom_call.1} parent=15 // pred_check
          %p164 = pneg %p86
        $region22: #{tpu_custom_call.1} parent=15 // pred_check_branch
          %166 = sbr.rel (%p164) target = $region24
        $region23: #{tpu_custom_call.1} parent=15 // pred_region
          %s167 = sand.u32 %s76, 1
          %s168 = scalar_lea.sflag [#allocation6], %s167
          %s169 = sand.u32 %s76, 1
          %s170 = smul.addr %s169, 128
          %s171 = scalar_lea.vmem [#allocation5], %s170
          %s172 = smul.u32 16, %s26
          %s174 = ssub.s32 2048, 2048
          %175 = vsyncadd %s168, %s174
          %s176 = smul.addr %s24, 16
          %s177 = sadd.s32 %s172, %s176
          %s178 = smul.addr %s177, 128
          %s179 = scalar_lea.hbm %s1, %s178
          %s180 = sshll.u32 %s171, 4
          %s181 = int_to_ptr.vmem [resolvable:$true] %s180
          %186 = dma.hbm_to_vmem [thread:$0]  %s179, 2048, %s181, %s168, 128, 128, 8
        $region24: #{tpu_custom_call.1} parent=15 // pred_fallthru
          _
      $region16: #{tpu_custom_call.1} parent=5 // pred_fallthru
        _
      %p187 = scmp.le.s32.totalorder 1, %s17
      %p188 = scmp.lt.s32.totalorder %s17, 3
      %p189 = pnand %p187, %p188
      %p190 = pneg %p189
      // Predicated region
      $region25: #{tpu_custom_call.1} parent=5 // pred_check
        _
      $region26: #{tpu_custom_call.1} parent=5 // pred_check_branch
        %192 = sbr.rel (%p189) target = $region28
      $region27: #{tpu_custom_call.1} parent=5 // pred_region
        %s193 = ssub.s32 %s17, 1
        %s194 = sand.u32 %s51, 1
        %s195 = scalar_lea.sflag [#allocation3], %s194
        %s196 = sand.u32 %s51, 1
        %s197 = smul.addr %s196, 128
        %s198 = scalar_lea.vmem [#allocation2], %s197
        // Predicated region
        $region29: #{tpu_custom_call.1} parent=27 // pred_check
          %p199 = pneg %p64
        $region30: #{tpu_custom_call.1} parent=27 // pred_check_branch
          %201 = sbr.rel (%p199) target = $region32
        $region31: #{tpu_custom_call.1} parent=27 // pred_region
          %202 = dma.done %s195, 2048
        $region32: #{tpu_custom_call.1} parent=27 // pred_fallthru
          _
        %s203 = sand.u32 %s79, 1
        %s204 = scalar_lea.sflag [#allocation6], %s203
        %s205 = sand.u32 %s79, 1
        %s206 = smul.addr %s205, 128
        %s207 = scalar_lea.vmem [#allocation5], %s206
        // Predicated region
        $region33: #{tpu_custom_call.1} parent=27 // pred_check
          %p208 = pneg %p92
        $region34: #{tpu_custom_call.1} parent=27 // pred_check_branch
          %210 = sbr.rel (%p208) target = $region36
        $region35: #{tpu_custom_call.1} parent=27 // pred_region
          %211 = dma.done %s204, 2048
        $region36: #{tpu_custom_call.1} parent=27 // pred_fallthru
          _
        %s212 = sand.u32 %s51, 1
        %s213 = scalar_lea.sflag [#allocation3], %s212
        %s214 = sand.u32 %s51, 1
        %s215 = smul.addr %s214, 128
        %s216 = scalar_lea.vmem [#allocation2], %s215
        %p217 = pneg %p64
        %p218 = pneg %p61
        %s219 = sand.u32 %s79, 1
        %s220 = scalar_lea.sflag [#allocation6], %s219
        %s221 = sand.u32 %s79, 1
        %s222 = smul.addr %s221, 128
        %s223 = scalar_lea.vmem [#allocation5], %s222
        %p224 = pneg %p92
        %p225 = pneg %p89
        %p226 = pneg %p122
        %p227 = pneg %p119
        %s228 = sand.u32 %s109, 1
        %s229 = scalar_lea.sflag [#allocation4], %s228
        %s230 = sand.u32 %s109, 1
        %s231 = smul.addr %s230, 128
        %s232 = scalar_lea.vmem [#allocation7], %s231
        %s233 = smul.u32 16, %s28
        %s234 = smul.u32 16, %s29
        %s235 = smul.u32 16, %s28
        %v236 = vld [vmem:[%s198] sm:$0xff]
        %v237 = vld [vmem:[%s198 + $0x8] sm:$0xff]
        %v238 = vld [vmem:[%s198 + $0x10] sm:$0xff]
        %v239 = vld [vmem:[%s198 + $0x18] sm:$0xff]
        %v240 = vld [vmem:[%s198 + $0x20] sm:$0xff]
        %v241 = vld [vmem:[%s198 + $0x28] sm:$0xff]
        %v242 = vld [vmem:[%s198 + $0x30] sm:$0xff]
        %v243 = vld [vmem:[%s198 + $0x38] sm:$0xff]
        %v244 = vld [vmem:[%s198 + $0x40] sm:$0xff]
        %v245 = vld [vmem:[%s198 + $0x48] sm:$0xff]
        %v246 = vld [vmem:[%s198 + $0x50] sm:$0xff]
        %v247 = vld [vmem:[%s198 + $0x58] sm:$0xff]
        %v248 = vld [vmem:[%s198 + $0x60] sm:$0xff]
        %v249 = vld [vmem:[%s198 + $0x68] sm:$0xff]
        %v250 = vld [vmem:[%s198 + $0x70] sm:$0xff]
        %v251 = vld [vmem:[%s198 + $0x78] sm:$0xff]
        %v252 = vld [vmem:[%s207] sm:$0xff]
        %v253 = vld [vmem:[%s207 + $0x8] sm:$0xff]
        %v254 = vld [vmem:[%s207 + $0x10] sm:$0xff]
        %v255 = vld [vmem:[%s207 + $0x18] sm:$0xff]
        %v256 = vld [vmem:[%s207 + $0x20] sm:$0xff]
        %v257 = vld [vmem:[%s207 + $0x28] sm:$0xff]
        %v258 = vld [vmem:[%s207 + $0x30] sm:$0xff]
        %v259 = vld [vmem:[%s207 + $0x38] sm:$0xff]
        %v260 = vld [vmem:[%s207 + $0x40] sm:$0xff]
        %v261 = vld [vmem:[%s207 + $0x48] sm:$0xff]
        %v262 = vld [vmem:[%s207 + $0x50] sm:$0xff]
        %v263 = vld [vmem:[%s207 + $0x58] sm:$0xff]
        %v264 = vld [vmem:[%s207 + $0x60] sm:$0xff]
        %v265 = vld [vmem:[%s207 + $0x68] sm:$0xff]
        %v266 = vld [vmem:[%s207 + $0x70] sm:$0xff]
        %v267 = vld [vmem:[%s207 + $0x78] sm:$0xff]
        %v268 = vmul.f32 %v236, %v236
        %v269 = vmul.f32 %v237, %v237
        %v270 = vmul.f32 %v238, %v238
        %v271 = vmul.f32 %v239, %v239
        %v272 = vmul.f32 %v240, %v240
        %v273 = vmul.f32 %v241, %v241
        %v274 = vmul.f32 %v242, %v242
        %v275 = vmul.f32 %v243, %v243
        %v276 = vmul.f32 %v244, %v244
        %v277 = vmul.f32 %v245, %v245
        %v278 = vmul.f32 %v246, %v246
        %v279 = vmul.f32 %v247, %v247
        %v280 = vmul.f32 %v248, %v248
        %v281 = vmul.f32 %v249, %v249
        %v282 = vmul.f32 %v250, %v250
        %v283 = vmul.f32 %v251, %v251
        %284 = vadd.xlane.f32.xlu0 %v268
        %v285 = vpop.xlane.xlu0 %284
        %286 = vadd.xlane.f32.xlu0 %v269
        %v287 = vpop.xlane.xlu0 %286
        %288 = vadd.xlane.f32.xlu0 %v270
        %v289 = vpop.xlane.xlu0 %288
        %290 = vadd.xlane.f32.xlu0 %v271
        %v291 = vpop.xlane.xlu0 %290
        %292 = vadd.xlane.f32.xlu0 %v272
        %v293 = vpop.xlane.xlu0 %292
        %294 = vadd.xlane.f32.xlu0 %v273
        %v295 = vpop.xlane.xlu0 %294
        %296 = vadd.xlane.f32.xlu0 %v274
        %v297 = vpop.xlane.xlu0 %296
        %298 = vadd.xlane.f32.xlu0 %v275
        %v299 = vpop.xlane.xlu0 %298
        %300 = vadd.xlane.f32.xlu0 %v276
        %v301 = vpop.xlane.xlu0 %300
        %302 = vadd.xlane.f32.xlu0 %v277
        %v303 = vpop.xlane.xlu0 %302
        %304 = vadd.xlane.f32.xlu0 %v278
        %v305 = vpop.xlane.xlu0 %304
        %306 = vadd.xlane.f32.xlu0 %v279
        %v307 = vpop.xlane.xlu0 %306
        %308 = vadd.xlane.f32.xlu0 %v280
        %v309 = vpop.xlane.xlu0 %308
        %310 = vadd.xlane.f32.xlu0 %v281
        %v311 = vpop.xlane.xlu0 %310
        %312 = vadd.xlane.f32.xlu0 %v282
        %v313 = vpop.xlane.xlu0 %312
        %314 = vadd.xlane.f32.xlu0 %v283
        %v315 = vpop.xlane.xlu0 %314
        %v316 = vmax.f32 %v285, 1e-24
        %v317 = vmax.f32 %v287, 1e-24
        %v318 = vmax.f32 %v289, 1e-24
        %v319 = vmax.f32 %v291, 1e-24
        %v320 = vmax.f32 %v293, 1e-24
        %v321 = vmax.f32 %v295, 1e-24
        %v322 = vmax.f32 %v297, 1e-24
        %v323 = vmax.f32 %v299, 1e-24
        %v324 = vmax.f32 %v301, 1e-24
        %v325 = vmax.f32 %v303, 1e-24
        %v326 = vmax.f32 %v305, 1e-24
        %v327 = vmax.f32 %v307, 1e-24
        %v328 = vmax.f32 %v309, 1e-24
        %v329 = vmax.f32 %v311, 1e-24
        %v330 = vmax.f32 %v313, 1e-24
        %v331 = vmax.f32 %v315, 1e-24
        %v332 = vrsqrt.pop %v316
        %v333 = vrsqrt.pop %v317
        %v334 = vrsqrt.pop %v318
        %v335 = vrsqrt.pop %v319
        %v336 = vrsqrt.pop %v320
        %v337 = vrsqrt.pop %v321
        %v338 = vrsqrt.pop %v322
        %v339 = vrsqrt.pop %v323
        %v340 = vrsqrt.pop %v324
        %v341 = vrsqrt.pop %v325
        %v342 = vrsqrt.pop %v326
        %v343 = vrsqrt.pop %v327
        %v344 = vrsqrt.pop %v328
        %v345 = vrsqrt.pop %v329
        %v346 = vrsqrt.pop %v330
        %v347 = vrsqrt.pop %v331
        %v348 = vmul.f32 %v252, %v252
        %v349 = vmul.f32 %v253, %v253
        %v350 = vmul.f32 %v254, %v254
        %v351 = vmul.f32 %v255, %v255
        %v352 = vmul.f32 %v256, %v256
        %v353 = vmul.f32 %v257, %v257
        %v354 = vmul.f32 %v258, %v258
        %v355 = vmul.f32 %v259, %v259
        %v356 = vmul.f32 %v260, %v260
        %v357 = vmul.f32 %v261, %v261
        %v358 = vmul.f32 %v262, %v262
        %v359 = vmul.f32 %v263, %v263
        %v360 = vmul.f32 %v264, %v264
        %v361 = vmul.f32 %v265, %v265
        %v362 = vmul.f32 %v266, %v266
        %v363 = vmul.f32 %v267, %v267
        %364 = vadd.xlane.f32.xlu0 %v348
        %v365 = vpop.xlane.xlu0 %364
        %366 = vadd.xlane.f32.xlu0 %v349
        %v367 = vpop.xlane.xlu0 %366
        %368 = vadd.xlane.f32.xlu0 %v350
        %v369 = vpop.xlane.xlu0 %368
        %370 = vadd.xlane.f32.xlu0 %v351
        %v371 = vpop.xlane.xlu0 %370
        %372 = vadd.xlane.f32.xlu0 %v352
        %v373 = vpop.xlane.xlu0 %372
        %374 = vadd.xlane.f32.xlu0 %v353
        %v375 = vpop.xlane.xlu0 %374
        %376 = vadd.xlane.f32.xlu0 %v354
        %v377 = vpop.xlane.xlu0 %376
        %378 = vadd.xlane.f32.xlu0 %v355
        %v379 = vpop.xlane.xlu0 %378
        %380 = vadd.xlane.f32.xlu0 %v356
        %v381 = vpop.xlane.xlu0 %380
        %382 = vadd.xlane.f32.xlu0 %v357
        %v383 = vpop.xlane.xlu0 %382
        %384 = vadd.xlane.f32.xlu0 %v358
        %v385 = vpop.xlane.xlu0 %384
        %386 = vadd.xlane.f32.xlu0 %v359
        %v387 = vpop.xlane.xlu0 %386
        %388 = vadd.xlane.f32.xlu0 %v360
        %v389 = vpop.xlane.xlu0 %388
        %390 = vadd.xlane.f32.xlu0 %v361
        %v391 = vpop.xlane.xlu0 %390
        %392 = vadd.xlane.f32.xlu0 %v362
        %v393 = vpop.xlane.xlu0 %392
        %394 = vadd.xlane.f32.xlu0 %v363
        %v395 = vpop.xlane.xlu0 %394
        %v396 = vmax.f32 %v365, 1e-24
        %v397 = vmax.f32 %v367, 1e-24
        %v398 = vmax.f32 %v369, 1e-24
        %v399 = vmax.f32 %v371, 1e-24
        %v400 = vmax.f32 %v373, 1e-24
        %v401 = vmax.f32 %v375, 1e-24
        %v402 = vmax.f32 %v377, 1e-24
        %v403 = vmax.f32 %v379, 1e-24
        %v404 = vmax.f32 %v381, 1e-24
        %v405 = vmax.f32 %v383, 1e-24
        %v406 = vmax.f32 %v385, 1e-24
        %v407 = vmax.f32 %v387, 1e-24
        %v408 = vmax.f32 %v389, 1e-24
        %v409 = vmax.f32 %v391, 1e-24
        %v410 = vmax.f32 %v393, 1e-24
        %v411 = vmax.f32 %v395, 1e-24
        %v412 = vrsqrt.pop %v396
        %v413 = vrsqrt.pop %v397
        %v414 = vrsqrt.pop %v398
        %v415 = vrsqrt.pop %v399
        %v416 = vrsqrt.pop %v400
        %v417 = vrsqrt.pop %v401
        %v418 = vrsqrt.pop %v402
        %v419 = vrsqrt.pop %v403
        %v420 = vrsqrt.pop %v404
        %v421 = vrsqrt.pop %v405
        %v422 = vrsqrt.pop %v406
        %v423 = vrsqrt.pop %v407
        %v424 = vrsqrt.pop %v408
        %v425 = vrsqrt.pop %v409
        %v426 = vrsqrt.pop %v410
        %v427 = vrsqrt.pop %v411
        %v428 = vmul.f32 %v236, %v332
        %v429 = vmul.f32 %v237, %v333
        %v430 = vmul.f32 %v238, %v334
        %v431 = vmul.f32 %v239, %v335
        %v432 = vmul.f32 %v240, %v336
        %v433 = vmul.f32 %v241, %v337
        %v434 = vmul.f32 %v242, %v338
        %v435 = vmul.f32 %v243, %v339
        %v436 = vmul.f32 %v244, %v340
        %v437 = vmul.f32 %v245, %v341
        %v438 = vmul.f32 %v246, %v342
        %v439 = vmul.f32 %v247, %v343
        %v440 = vmul.f32 %v248, %v344
        %v441 = vmul.f32 %v249, %v345
        %v442 = vmul.f32 %v250, %v346
        %v443 = vmul.f32 %v251, %v347
        %v444 = vmul.f32 %v252, %v412
        %v445 = vmul.f32 %v253, %v413
        %v446 = vmul.f32 %v254, %v414
        %v447 = vmul.f32 %v255, %v415
        %v448 = vmul.f32 %v256, %v416
        %v449 = vmul.f32 %v257, %v417
        %v450 = vmul.f32 %v258, %v418
        %v451 = vmul.f32 %v259, %v419
        %v452 = vmul.f32 %v260, %v420
        %v453 = vmul.f32 %v261, %v421
        %v454 = vmul.f32 %v262, %v422
        %v455 = vmul.f32 %v263, %v423
        %v456 = vmul.f32 %v264, %v424
        %v457 = vmul.f32 %v265, %v425
        %v458 = vmul.f32 %v266, %v426
        %v459 = vmul.f32 %v267, %v427
        %460 = vmatprep.subr.mxu0 0.0
        %461 = vmatpush1.xpose.msra.mxu0 %v459
        %462 = vmatprep.subr.mxu0 0.0
        %463 = vmatpush1.xpose.msra.mxu0 %v458
        %464 = vmatprep.subr.mxu0 0.0
        %465 = vmatpush1.xpose.msra.mxu0 %v457
        %466 = vmatprep.subr.mxu0 0.0
        %467 = vmatpush1.xpose.msra.mxu0 %v456
        %468 = vmatprep.subr.mxu0 0.0
        %469 = vmatpush1.xpose.msra.mxu0 %v455
        %470 = vmatprep.subr.mxu0 0.0
        %471 = vmatpush1.xpose.msra.mxu0 %v454
        %472 = vmatprep.subr.mxu0 0.0
        %473 = vmatpush1.xpose.msra.mxu0 %v453
        %474 = vmatprep.subr.mxu0 0.0
        %475 = vmatpush1.xpose.msra.mxu0 %v452
        %476 = vmatprep.subr.mxu0 0.0
        %477 = vmatpush1.xpose.msra.mxu0 %v451
        %478 = vmatprep.subr.mxu0 0.0
        %479 = vmatpush1.xpose.msra.mxu0 %v450
        %480 = vmatprep.subr.mxu0 0.0
        %481 = vmatpush1.xpose.msra.mxu0 %v449
        %482 = vmatprep.subr.mxu0 0.0
        %483 = vmatpush1.xpose.msra.mxu0 %v448
        %484 = vmatprep.subr.mxu0 0.0
        %485 = vmatpush1.xpose.msra.mxu0 %v447
        %486 = vmatprep.subr.mxu0 0.0
        %487 = vmatpush1.xpose.msra.mxu0 %v446
        %488 = vmatprep.subr.mxu0 0.0
        %489 = vmatpush1.xpose.msra.mxu0 %v445
        %490 = vmatprep.subr.mxu0 0.0
        %491 = vmatpush1.xpose.msra.mxu0 %v444
        %492 = vmatprep.subr.mxu0 0.0
        %493 = vmatpush2.xpose.msra.mxu0 0.0
        %494 = vmatprep.subr.mxu0 0.0
        %495 = vmatpush2.xpose.msra.mxu0 0.0
        %496 = vmatprep.subr.mxu0 0.0
        %497 = vmatpush2.xpose.msra.mxu0 0.0
        %498 = vmatprep.subr.mxu0 0.0
        %499 = vmatpush2.xpose.msra.mxu0 0.0
        %500 = vmatprep.subr.mxu0 0.0
        %501 = vmatpush2.xpose.msra.mxu0 0.0
        %502 = vmatprep.subr.mxu0 0.0
        %503 = vmatpush2.xpose.msra.mxu0 0.0
        %504 = vmatprep.subr.mxu0 0.0
        %505 = vmatpush2.xpose.msra.mxu0 0.0
        %506 = vmatprep.subr.mxu0 0.0
        %507 = vmatpush2.xpose.msra.mxu0 0.0
        %508 = vmatprep.subr.mxu0 0.0
        %509 = vmatpush2.xpose.msra.mxu0 0.0
        %510 = vmatprep.subr.mxu0 0.0
        %511 = vmatpush2.xpose.msra.mxu0 0.0
        %512 = vmatprep.subr.mxu0 0.0
        %513 = vmatpush2.xpose.msra.mxu0 0.0
        %514 = vmatprep.subr.mxu0 0.0
        %515 = vmatpush2.xpose.msra.mxu0 0.0
        %516 = vmatprep.subr.mxu0 0.0
        %517 = vmatpush2.xpose.msra.mxu0 0.0
        %518 = vmatprep.subr.mxu0 0.0
        %519 = vmatpush2.xpose.msra.mxu0 0.0
        %520 = vmatprep.subr.mxu0 0.0
        %521 = vmatpush2.xpose.msra.mxu0 0.0
        %522 = vmatprep.subr.mxu0 0.0
        %523 = vmatpush2.xpose.msra.mxu0 0.0
        %524 = vmatprep.mubr.f32.mxu0 0.0
        %525 = vmatmul.mubr.f32.gmra.mxu0 %v428
        %v526 = vpop.f32.mrf.mxu0
        %v527 = vadd.f32 0.0, %v526
        %v528 = vpop.f32.mrf.mxu0
        %529 = vmatprep.mubr.f32.mxu0 0.0
        %530 = vmatmul.mubr.f32.gmra.mxu0 %v429
        %v531 = vpop.f32.mrf.mxu0
        %v532 = vadd.f32 0.0, %v531
        %v533 = vpop.f32.mrf.mxu0
        %534 = vmatprep.mubr.f32.mxu0 0.0
        %535 = vmatmul.mubr.f32.gmra.mxu0 %v430
        %v536 = vpop.f32.mrf.mxu0
        %v537 = vadd.f32 0.0, %v536
        %v538 = vpop.f32.mrf.mxu0
        %539 = vmatprep.mubr.f32.mxu0 0.0
        %540 = vmatmul.mubr.f32.gmra.mxu0 %v431
        %v541 = vpop.f32.mrf.mxu0
        %v542 = vadd.f32 0.0, %v541
        %v543 = vpop.f32.mrf.mxu0
        %544 = vmatprep.mubr.f32.mxu0 0.0
        %545 = vmatmul.mubr.f32.gmra.mxu0 %v432
        %v546 = vpop.f32.mrf.mxu0
        %v547 = vadd.f32 0.0, %v546
        %v548 = vpop.f32.mrf.mxu0
        %549 = vmatprep.mubr.f32.mxu0 0.0
        %550 = vmatmul.mubr.f32.gmra.mxu0 %v433
        %v551 = vpop.f32.mrf.mxu0
        %v552 = vadd.f32 0.0, %v551
        %v553 = vpop.f32.mrf.mxu0
        %554 = vmatprep.mubr.f32.mxu0 0.0
        %555 = vmatmul.mubr.f32.gmra.mxu0 %v434
        %v556 = vpop.f32.mrf.mxu0
        %v557 = vadd.f32 0.0, %v556
        %v558 = vpop.f32.mrf.mxu0
        %559 = vmatprep.mubr.f32.mxu0 0.0
        %560 = vmatmul.mubr.f32.gmra.mxu0 %v435
        %v561 = vpop.f32.mrf.mxu0
        %v562 = vadd.f32 0.0, %v561
        %v563 = vpop.f32.mrf.mxu0
        %564 = vmatprep.mubr.f32.mxu0 0.0
        %565 = vmatmul.mubr.f32.gmra.mxu0 %v436
        %v566 = vpop.f32.mrf.mxu0
        %v567 = vadd.f32 0.0, %v566
        %v568 = vpop.f32.mrf.mxu0
        %569 = vmatprep.mubr.f32.mxu0 0.0
        %570 = vmatmul.mubr.f32.gmra.mxu0 %v437
        %v571 = vpop.f32.mrf.mxu0
        %v572 = vadd.f32 0.0, %v571
        %v573 = vpop.f32.mrf.mxu0
        %574 = vmatprep.mubr.f32.mxu0 0.0
        %575 = vmatmul.mubr.f32.gmra.mxu0 %v438
        %v576 = vpop.f32.mrf.mxu0
        %v577 = vadd.f32 0.0, %v576
        %v578 = vpop.f32.mrf.mxu0
        %579 = vmatprep.mubr.f32.mxu0 0.0
        %580 = vmatmul.mubr.f32.gmra.mxu0 %v439
        %v581 = vpop.f32.mrf.mxu0
        %v582 = vadd.f32 0.0, %v581
        %v583 = vpop.f32.mrf.mxu0
        %584 = vmatprep.mubr.f32.mxu0 0.0
        %585 = vmatmul.mubr.f32.gmra.mxu0 %v440
        %v586 = vpop.f32.mrf.mxu0
        %v587 = vadd.f32 0.0, %v586
        %v588 = vpop.f32.mrf.mxu0
        %589 = vmatprep.mubr.f32.mxu0 0.0
        %590 = vmatmul.mubr.f32.gmra.mxu0 %v441
        %v591 = vpop.f32.mrf.mxu0
        %v592 = vadd.f32 0.0, %v591
        %v593 = vpop.f32.mrf.mxu0
        %594 = vmatprep.mubr.f32.mxu0 0.0
        %595 = vmatmul.mubr.f32.gmra.mxu0 %v442
        %v596 = vpop.f32.mrf.mxu0
        %v597 = vadd.f32 0.0, %v596
        %v598 = vpop.f32.mrf.mxu0
        %599 = vmatprep.mubr.f32.mxu0 0.0
        %600 = vmatmul.mubr.f32.gmra.mxu0 %v443
        %v601 = vpop.f32.mrf.mxu0
        %v602 = vadd.f32 0.0, %v601
        %v603 = vpop.f32.mrf.mxu0
        %604 = vdwg.mxu0
        %605 = vst [vmem:[%s232] sm:$0xff] %v527
        %606 = vst [vmem:[%s232 + $0x8] sm:$0xff] %v532
        %607 = vst [vmem:[%s232 + $0x10] sm:$0xff] %v537
        %608 = vst [vmem:[%s232 + $0x18] sm:$0xff] %v542
        %609 = vst [vmem:[%s232 + $0x20] sm:$0xff] %v547
        %610 = vst [vmem:[%s232 + $0x28] sm:$0xff] %v552
        %611 = vst [vmem:[%s232 + $0x30] sm:$0xff] %v557
        %612 = vst [vmem:[%s232 + $0x38] sm:$0xff] %v562
        %613 = vst [vmem:[%s232 + $0x40] sm:$0xff] %v567
        %614 = vst [vmem:[%s232 + $0x48] sm:$0xff] %v572
        %615 = vst [vmem:[%s232 + $0x50] sm:$0xff] %v577
        %616 = vst [vmem:[%s232 + $0x58] sm:$0xff] %v582
        %617 = vst [vmem:[%s232 + $0x60] sm:$0xff] %v587
        %618 = vst [vmem:[%s232 + $0x68] sm:$0xff] %v592
        %619 = vst [vmem:[%s232 + $0x70] sm:$0xff] %v597
        %620 = vst [vmem:[%s232 + $0x78] sm:$0xff] %v602
        %s621 = sand.u32 %s109, 1
        %s622 = scalar_lea.sflag [#allocation4], %s621
        %s623 = sand.u32 %s109, 1
        %s624 = smul.addr %s623, 128
        %s625 = scalar_lea.vmem [#allocation7], %s624
        // Predicated region
        $region37: #{tpu_custom_call.1} parent=27 // pred_check
          %p626 = pneg %p119
        $region38: #{tpu_custom_call.1} parent=27 // pred_check_branch
          %628 = sbr.rel (%p626) target = $region40
        $region39: #{tpu_custom_call.1} parent=27 // pred_region
          %s629 = smul.u32 16, %s28
          %s631 = ssub.s32 2048, 2048
          %632 = vsyncadd %s622, %s631
          %s633 = sadd.s32 %s29, %s629
          %s634 = smul.addr %s27, 16
          %s635 = sadd.s32 %s633, %s634
          %s636 = smul.addr %s635, 128
          %s637 = scalar_lea.hbm %s2, %s636
          %s638 = sshll.u32 %s625, 4
          %s639 = int_to_ptr.vmem [resolvable:$true] %s638
          %644 = dma.vmem_to_hbm [thread:$0]  %s639, 2048, %s637, %s622, 128, 128, 8
        $region40: #{tpu_custom_call.1} parent=27 // pred_fallthru
          _
      $region28: #{tpu_custom_call.1} parent=5 // pred_fallthru
        _
      %p645 = scmp.le.s32.totalorder 2, %s17
      // Predicated region
      $region41: #{tpu_custom_call.1} parent=5 // pred_check
        %p646 = pneg %p645
      $region42: #{tpu_custom_call.1} parent=5 // pred_check_branch
        %648 = sbr.rel (%p646) target = $region44
      $region43: #{tpu_custom_call.1} parent=5 // pred_region
        %s649 = ssub.s32 %s17, 2
        // Predicated region
        $region45: #{tpu_custom_call.1} parent=43 // pred_check
          %p650 = pneg %p125
        $region46: #{tpu_custom_call.1} parent=43 // pred_check_branch
          %652 = sbr.rel (%p650) target = $region48
        $region47: #{tpu_custom_call.1} parent=43 // pred_region
          %s653 = sand.u32 %s110, 1
          %s654 = scalar_lea.sflag [#allocation4], %s653
          %s655 = sand.u32 %s110, 1
          %s656 = smul.addr %s655, 128
          %s657 = scalar_lea.vmem [#allocation7], %s656
          %658 = dma.done %s654, 2048
        $region48: #{tpu_custom_call.1} parent=43 // pred_fallthru
          _
      $region44: #{tpu_custom_call.1} parent=5 // pred_fallthru
        _
    $region6: #{tpu_custom_call.1} parent=1 // loop_footer
      %s21 = sadd.s32 1, %s17
    $region7: #{tpu_custom_call.1} parent=1 // loop_footer_branch
      %16 = sbr.rel target = $region3
    $region8: #{tpu_custom_call.1} parent=1 // loop_exit
      _
    %659 = vsyncpa [#allocation3], 1
    %s660 = scalar_lea.sflag [#allocation3], 1
    %661 = vsyncpa %s660, 1
    %662 = vsyncpa [#allocation6], 1
    %s663 = scalar_lea.sflag [#allocation6], 1
    %664 = vsyncpa %s663, 1
    %665 = vsyncpa [#allocation4], 1
    %s666 = scalar_lea.sflag [#allocation4], 1
    %667 = vsyncpa %s666, 1

</llo_original>
